<compile_context>
chip_gen: v5e
topology: v5e:2x2
jax: 0.10.0
libtpu: 0.0.40
codegen_flags: <defaults>
</compile_context>

<pallas_src>
import functools
import math

import jax
import jax.numpy as jnp
from jax import lax
from jax.experimental import pallas as pl
from jax.experimental.pallas import tpu as pltpu


_VMEM_LIMIT = 32 * 1024 * 1024   # requested scoped VMEM (safe on v5e/v6e/v7x)
_VMEM_BUDGET = 24 * 1024 * 1024  # planning budget (leave headroom for Mosaic)


def _round_up(x, m):
    return (x + m - 1) // m * m


def _cpad(c):
    """Pad a channel count up to a lane-dense multiple of 128."""
    return _round_up(c, 128)


# ----------------------------------------------------------------------------
# Tile planning (VMEM-budgeted, weight-residency preferred)
# ----------------------------------------------------------------------------

def _vmem_bytes(tm, tk, tn, has_res, multi_k):
    a = 2 * tm * tk * 2                 # bf16 A patches, double-buffered
    b = 2 * tk * tn * 2                 # bf16 weights, double-buffered
    c = 2 * tn * 4                      # f32 bias row
    o = 2 * tm * tn * 2                 # bf16 output
    r = 2 * tm * tn * 2 if has_res else 0
    acc = tm * tn * 4 if multi_k else 0  # f32 accumulator scratch
    return a + b + c + o + r + acc


def _plan_tiles(M, K, Np, has_res, budget=_VMEM_BUDGET):
    """Pick (tm, tk, tn).  Prefers big M tiles and a fully-resident weight."""
    if M >= 1024:
        tm_cands = (512, 256, 128)
    elif M >= 512:
        tm_cands = (256, 128)
    elif M >= 256:
        tm_cands = (128,)
    else:
        tm_cands = (_round_up(M, 8),)
    for tm in tm_cands:
        mi = -(-M // tm)
        # Split Cout in two when there is only one M tile so both v7x
        # TensorCores get work; keep full-Np blocks otherwise.
        if mi == 1 and Np >= 256 and (Np // 2) % 128 == 0:
            tn = Np // 2
        else:
            tn = Np
        tk_cands = [K] + [c for c in (512, 384, 256, 128) if c < K and K % c == 0]
        for tk in tk_cands:
            if _vmem_bytes(tm, tk, tn, has_res, tk < K) <= budget:
                return tm, tk, tn
    tm = 128 if M >= 128 else _round_up(M, 8)
    tk = 128 if K % 128 == 0 else K
    return tm, tk, Np


# ----------------------------------------------------------------------------
# Pallas kernels: fused matmul + bias (+ residual) (+ ReLU)
# (BN scale already folded into the weights.)
# ----------------------------------------------------------------------------

def _fused_mm_kernel(*refs, relu, has_res, multi_k):
    if multi_k:
        acc_ref = refs[-1]
        refs = refs[:-1]
    if has_res:
        a_ref, b_ref, c_ref, r_ref, o_ref = refs
    else:
        a_ref, b_ref, c_ref, o_ref = refs
        r_ref = None

    def epilogue(acc):
        y = acc + c_ref[...]
        if has_res:
            y = y + r_ref[...].astype(jnp.float32)
        if relu:
            y = jnp.maximum(y, 0.0)
        o_ref[...] = y.astype(o_ref.dtype)

    if multi_k:
        @pl.when(pl.program_id(2) == 0)
        def _():
            acc_ref[...] = jnp.zeros_like(acc_ref)

        acc_ref[...] += jnp.dot(a_ref[...], b_ref[...],
                                preferred_element_type=jnp.float32)

        @pl.when(pl.program_id(2) == pl.num_programs(2) - 1)
        def _():
            epilogue(acc_ref[...])
    else:
        # Weight-resident path: single K block, no accumulator round-trip.
        epilogue(jnp.dot(a_ref[...], b_ref[...],
                         preferred_element_type=jnp.float32))


def matmul_bias_act(patches, w_mat, bias, residual=None, relu=True,
                    out_dtype=jnp.bfloat16):
    """Fused (M,K)@(K,Np) matmul + per-channel bias (+res) (+ReLU).

    patches: (M, K) bf16;  w_mat: (K, Np) bf16 (K, Np already 128-aligned,
    BN scale folded in);  bias: (Np,) f32;  residual: (M, Np) bf16 or None.
    """
    M, K = patches.shape
    K2, Np = w_mat.shape
    assert K == K2 and bias.shape[-1] == Np

    has_res = residual is not None
    tm, tk, tn = _plan_tiles(M, K, Np, has_res)

    Mp = _round_up(M, tm)
    if Mp != M:
        patches = jnp.pad(patches, ((0, Mp - M), (0, 0)))
        if has_res:
            residual = jnp.pad(residual, ((0, Mp - M), (0, 0)))

    mi, nj, kt = Mp // tm, Np // tn, K // tk
    multi_k = kt > 1

    c2 = bias.reshape(1, Np).astype(jnp.float32)

    a_spec = pl.BlockSpec((tm, tk), lambda i, j, k: (i, k))
    b_spec = pl.BlockSpec((tk, tn), lambda i, j, k: (k, j))   # constant when kt==1
    c_spec = pl.BlockSpec((1, tn), lambda i, j, k: (0, j))
    r_spec = pl.BlockSpec((tm, tn), lambda i, j, k: (i, j))
    o_spec = pl.BlockSpec((tm, tn), lambda i, j, k: (i, j))

    in_specs = [a_spec, b_spec, c_spec] + ([r_spec] if has_res else [])
    args = (patches, w_mat, c2) + ((residual,) if has_res else ())
    scratch = [pltpu.VMEM((tm, tn), jnp.float32)] if multi_k else []

    kernel = functools.partial(_fused_mm_kernel, relu=relu,
                               has_res=has_res, multi_k=multi_k)

    out = pl.pallas_call(
        kernel,
        out_shape=jax.ShapeDtypeStruct((Mp, Np), out_dtype),
        grid_spec=pltpu.PrefetchScalarGridSpec(
            num_scalar_prefetch=0,
            grid=(mi, nj, kt),
            in_specs=in_specs,
            out_specs=o_spec,
            scratch_shapes=scratch),
        compiler_params=pltpu.CompilerParams(
            dimension_semantics=("parallel", "parallel", "arbitrary"),
            vmem_limit_bytes=_VMEM_LIMIT),
    )(*args)
    return out[:M] if Mp != M else out


# ----------------------------------------------------------------------------
# Head: Linear(512->256) + bias + row-wise L2 normalize (single kernel)
# ----------------------------------------------------------------------------

def _head_kernel(x_ref, w_ref, b_ref, o_ref, *, normalize):
    y = jnp.dot(x_ref[...], w_ref[...],
                preferred_element_type=jnp.float32) + b_ref[...]
    if normalize:
        ss = jnp.sum(y * y, axis=-1, keepdims=True)
        # F.normalize(p=2, eps=1e-12): x / max(||x||, eps)
        y = y * lax.rsqrt(jnp.maximum(ss, 1e-24))
    o_ref[...] = y


def head_linear(x, w_torch, b, normalize=True):
    """x: (M, 512) f32, w_torch: (out, in) like nn.Linear, b: (out,)."""
    M, K = x.shape
    N = w_torch.shape[0]
    w = w_torch.T  # (K, N)
    Mp = _round_up(M, 8)
    x_p = jnp.pad(x, ((0, Mp - M), (0, 0))) if Mp != M else x
    kernel = functools.partial(_head_kernel, normalize=normalize)
    out = pl.pallas_call(
        kernel,
        out_shape=jax.ShapeDtypeStruct((Mp, N), jnp.float32),
        grid=(1,),
        in_specs=[pl.BlockSpec((Mp, K), lambda i: (0, 0)),
                  pl.BlockSpec((K, N), lambda i: (0, 0)),
                  pl.BlockSpec((1, N), lambda i: (0, 0))],
        out_specs=pl.BlockSpec((Mp, N), lambda i: (0, 0)),
    )(x_p, w, b.reshape(1, N))
    return out[:M]


# ----------------------------------------------------------------------------
# im2col (JAX glue, bf16, kk-major / C-minor, K-alignment zeros folded in)
# TODO(synk): replace with in-kernel halo-aware shift-and-accumulate gathers.
# ----------------------------------------------------------------------------

def _im2col_3d(x, ksize, stride, padding, k_total):
    # x: (N, T, H, W, C) channels-last, bf16
    kt, kh, kw = ksize
    st, sh, sw = stride
    pt, ph, pw = padding
    x = jnp.pad(x, ((0, 0), (pt, pt), (ph, ph), (pw, pw), (0, 0)))
    N, T, H, W, C = x.shape
    To = (T - kt) // st + 1
    Ho = (H - kh) // sh + 1
    Wo = (W - kw) // sw + 1
    cols = []
    for dt in range(kt):
        for dh in range(kh):
            for dw in range(kw):
                cols.append(x[:,
                              dt:dt + st * (To - 1) + 1:st,
                              dh:dh + sh * (Ho - 1) + 1:sh,
                              dw:dw + sw * (Wo - 1) + 1:sw, :])
    used = kt * kh * kw * C
    if k_total > used:
        cols.append(jnp.zeros((N, To, Ho, Wo, k_total - used), x.dtype))
    patches = jnp.concatenate(cols, axis=-1).reshape(N * To * Ho * Wo, k_total)
    return patches, (N, To, Ho, Wo)


def _im2col_2d(x, ksize, stride, padding, k_total):
    kh, kw = ksize
    sh, sw = stride
    ph, pw = padding
    x = jnp.pad(x, ((0, 0), (ph, ph), (pw, pw), (0, 0)))
    N, H, W, C = x.shape
    Ho = (H - kh) // sh + 1
    Wo = (W - kw) // sw + 1
    cols = []
    for dh in range(kh):
        for dw in range(kw):
            cols.append(x[:,
                          dh:dh + sh * (Ho - 1) + 1:sh,
                          dw:dw + sw * (Wo - 1) + 1:sw, :])
    used = kh * kw * C
    if k_total > used:
        cols.append(jnp.zeros((N, Ho, Wo, k_total - used), x.dtype))
    patches = jnp.concatenate(cols, axis=-1).reshape(N * Ho * Wo, k_total)
    return patches, (N, Ho, Wo)


def conv3d_bn_act(x, cw, stride, padding, residual=None, relu=True):
    patches, shp = _im2col_3d(x, cw['ksize'], stride, padding, cw['kp'])
    y = matmul_bias_act(patches, cw['w'], cw['b'], residual=residual, relu=relu)
    return y, shp


def conv2d_bn_act(x, cw, stride, padding, residual=None, relu=True):
    patches, shp = _im2col_2d(x, cw['ksize'], stride, padding, cw['kp'])
    y = matmul_bias_act(patches, cw['w'], cw['b'], residual=residual, relu=relu)
    return y, shp


# ----------------------------------------------------------------------------
# Parameter initialization / static weight preparation (BN folded into conv)
# ----------------------------------------------------------------------------

def bn_fold_params(c, eps=1e-5):
    """Eval-mode BN (gamma=1, beta=0, mean=0, var=1) -> (scale, bias)."""
    gamma = jnp.ones((c,), jnp.float32)
    beta = jnp.zeros((c,), jnp.float32)
    mean = jnp.zeros((c,), jnp.float32)
    var = jnp.ones((c,), jnp.float32)
    scale = gamma / jnp.sqrt(var + eps)
    bias = beta - mean * scale
    return scale, bias


def init_conv3d(key, cout, cin, kt, kh, kw):
    fan_out = cout * kt * kh * kw
    std = math.sqrt(2.0 / fan_out)
    return std * jax.random.normal(key, (cout, cin, kt, kh, kw), jnp.float32)


def init_conv2d(key, cout, cin, kh, kw):
    fan_out = cout * kh * kw
    std = math.sqrt(2.0 / fan_out)
    return std * jax.random.normal(key, (cout, cin, kh, kw), jnp.float32)


def init_linear(key, out_f, in_f):
    k1, k2 = jax.random.split(key)
    bound = 1.0 / math.sqrt(in_f)
    w = jax.random.uniform(k1, (out_f, in_f), jnp.float32, -bound, bound)
    b = jax.random.uniform(k2, (out_f,), jnp.float32, -bound, bound)
    return w, b


def prep_conv3d(w_torch, scale, bias, cin_pad, cout_pad):
    """Torch (Cout,Cin,kt,kh,kw) * BN-scale -> matmul-ready bf16 (Kp, Cout_pad)."""
    cout, cin, kt, kh, kw = w_torch.shape
    w = w_torch * scale.reshape(cout, 1, 1, 1, 1)       # fold BN scale
    w = jnp.transpose(w, (2, 3, 4, 1, 0))               # (kt,kh,kw,Cin,Cout)
    w = jnp.pad(w, ((0, 0), (0, 0), (0, 0),
                    (0, cin_pad - cin), (0, cout_pad - cout)))
    K = kt * kh * kw * cin_pad
    Kp = _round_up(K, 128)
    w = w.reshape(K, cout_pad)
    if Kp != K:
        w = jnp.pad(w, ((0, Kp - K), (0, 0)))
    b = jnp.pad(bias, (0, cout_pad - cout))
    return {'w': w.astype(jnp.bfloat16), 'b': b.astype(jnp.float32),
            'ksize': (kt, kh, kw), 'kp': Kp}


def prep_conv2d(w_torch, scale, bias, cin_pad, cout_pad):
    cout, cin, kh, kw = w_torch.shape
    w = w_torch * scale.reshape(cout, 1, 1, 1)          # fold BN scale
    w = jnp.transpose(w, (2, 3, 1, 0))                  # (kh,kw,Cin,Cout)
    w = jnp.pad(w, ((0, 0), (0, 0), (0, cin_pad - cin), (0, cout_pad - cout)))
    K = kh * kw * cin_pad
    Kp = _round_up(K, 128)
    w = w.reshape(K, cout_pad)
    if Kp != K:
        w = jnp.pad(w, ((0, Kp - K), (0, 0)))
    b = jnp.pad(bias, (0, cout_pad - cout))
    return {'w': w.astype(jnp.bfloat16), 'b': b.astype(jnp.float32),
            'ksize': (kh, kw), 'kp': Kp}


def init_video_params(key):
    """r2plus1d_18 parameters (Conv2Plus1D blocks, [2,2,2,2])."""
    keys = iter(jax.random.split(key, 64))
    p = {}
    p['stem1'] = prep_conv3d(init_conv3d(next(keys), 45, 3, 1, 7, 7),
                             *bn_fold_params(45), 3, _cpad(45))
    p['stem2'] = prep_conv3d(init_conv3d(next(keys), 64, 45, 3, 1, 1),
                             *bn_fold_params(64), _cpad(45), _cpad(64))
    blocks = []
    inplanes = 64
    for planes, stride, nblocks in [(64, 1, 2), (128, 2, 2),
                                    (256, 2, 2), (512, 2, 2)]:
        for bi in range(nblocks):
            s = stride if bi == 0 else 1
            mid = (inplanes * planes * 3 * 3 * 3) // (
                inplanes * 3 * 3 + 3 * planes)
            blk = {
                'stride': s,
                'c1_s': prep_conv3d(init_conv3d(next(keys), mid, inplanes, 1, 3, 3),
                                    *bn_fold_params(mid),
                                    _cpad(inplanes), _cpad(mid)),
                'c1_t': prep_conv3d(init_conv3d(next(keys), planes, mid, 3, 1, 1),
                                    *bn_fold_params(planes),
                                    _cpad(mid), _cpad(planes)),
                'c2_s': prep_conv3d(init_conv3d(next(keys), mid, planes, 1, 3, 3),
                                    *bn_fold_params(mid),
                                    _cpad(planes), _cpad(mid)),
                'c2_t': prep_conv3d(init_conv3d(next(keys), planes, mid, 3, 1, 1),
                                    *bn_fold_params(planes),
                                    _cpad(mid), _cpad(planes)),
            }
            if s != 1 or inplanes != planes:
                blk['ds'] = prep_conv3d(
                    init_conv3d(next(keys), planes, inplanes, 1, 1, 1),
                    *bn_fold_params(planes), _cpad(inplanes), _cpad(planes))
            blocks.append(blk)
            inplanes = planes
    p['blocks'] = blocks
    return p


def init_audio_params(key):
    """resnet9 (BasicBlock [1,1,1,1]) with conv1 modified to 1 input channel."""
    keys = iter(jax.random.split(key, 32))
    p = {}
    p['conv1'] = prep_conv2d(init_conv2d(next(keys), 64, 1, 7, 7),
                             *bn_fold_params(64), 1, _cpad(64))
    blocks = []
    inplanes = 64
    for planes, stride in [(64, 1), (128, 2), (256, 2), (512, 2)]:
        blk = {
            'stride': stride,
            'conv1': prep_conv2d(init_conv2d(next(keys), planes, inplanes, 3, 3),
                                 *bn_fold_params(planes),
                                 _cpad(inplanes), _cpad(planes)),
            'conv2': prep_conv2d(init_conv2d(next(keys), planes, planes, 3, 3),
                                 *bn_fold_params(planes),
                                 _cpad(planes), _cpad(planes)),
        }
        if stride != 1 or inplanes != planes:
            blk['ds'] = prep_conv2d(init_conv2d(next(keys), planes, inplanes, 1, 1),
                                    *bn_fold_params(planes),
                                    _cpad(inplanes), _cpad(planes))
        blocks.append(blk)
        inplanes = planes
    p['blocks'] = blocks
    return p


# ----------------------------------------------------------------------------
# Network forwards (channels-last, padded channels carried through)
# ----------------------------------------------------------------------------

def _conv2plus1d(x, spat, temp, stride, relu, residual=None):
    """(1,3,3) spatial conv+BN+ReLU -> (3,1,1) temporal conv+BN(+res)(+ReLU)."""
    y, (n, t, h, w) = conv3d_bn_act(x, spat, (1, stride, stride), (0, 1, 1),
                                    relu=True)
    y = y.reshape(n, t, h, w, -1)
    y, shp = conv3d_bn_act(y, temp, (stride, 1, 1), (1, 0, 0),
                           residual=residual, relu=relu)
    return y, shp


def video_block(x, blk):
    s = blk['stride']
    c_in = x.shape[-1]
    out, (n, to, ho, wo) = _conv2plus1d(x, blk['c1_s'], blk['c1_t'], s, relu=True)
    out5 = out.reshape(n, to, ho, wo, -1)
    if 'ds' in blk:
        res, _ = conv3d_bn_act(x, blk['ds'], (s, s, s), (0, 0, 0), relu=False)
    else:
        res = x.reshape(-1, c_in)
    y, (n, to, ho, wo) = _conv2plus1d(out5, blk['c2_s'], blk['c2_t'], 1,
                                      relu=True, residual=res)
    return y.reshape(n, to, ho, wo, -1)


def video_forward(img_ncdhw, p):
    x = jnp.transpose(img_ncdhw.astype(jnp.bfloat16), (0, 2, 3, 4, 1))  # NTHWC
    y, (n, t, h, w) = conv3d_bn_act(x, p['stem1'], (1, 2, 2), (0, 3, 3), relu=True)
    y = y.reshape(n, t, h, w, -1)
    y, (n, t, h, w) = conv3d_bn_act(y, p['stem2'], (1, 1, 1), (1, 0, 0), relu=True)
    y = y.reshape(n, t, h, w, -1)
    for blk in p['blocks']:
        y = video_block(y, blk)
    # AdaptiveAvgPool3d((1,1,1)) + flatten; final C == 512 (no padding).
    return jnp.mean(y.astype(jnp.float32), axis=(1, 2, 3))


def audio_block(x, blk):
    s = blk['stride']
    c_in = x.shape[-1]
    y, (n, ho, wo) = conv2d_bn_act(x, blk['conv1'], (s, s), (1, 1), relu=True)
    y = y.reshape(n, ho, wo, -1)
    if 'ds' in blk:
        res, _ = conv2d_bn_act(x, blk['ds'], (s, s), (0, 0), relu=False)
    else:
        res = x.reshape(-1, c_in)
    out, _ = conv2d_bn_act(y, blk['conv2'], (1, 1), (1, 1),
                           residual=res, relu=True)
    return out.reshape(n, ho, wo, -1)


def audio_forward(spec_nchw, p):
    x = jnp.transpose(spec_nchw.astype(jnp.bfloat16), (0, 2, 3, 1))  # NHWC
    y, (n, h, w) = conv2d_bn_act(x, p['conv1'], (2, 2), (3, 3), relu=True)
    y = y.reshape(n, h, w, -1)
    # MaxPool2d(kernel=3, stride=2, padding=1) — window op kept as JAX glue.
    y = lax.reduce_window(y, jnp.asarray(-jnp.inf, y.dtype), lax.max,
                          (1, 3, 3, 1), (1, 2, 2, 1),
                          ((0, 0), (1, 1), (1, 1), (0, 0)))
    for blk in p['blocks']:
        y = audio_block(y, blk)
    return jnp.mean(y.astype(jnp.float32), axis=(1, 2))  # (N, 512)


def avmodel_forward(img, spec, params):
    """AVModel.forward with defaults (hc=1, use_mlp=False, norm_feat=True)."""
    img_feat = video_forward(img, params['video'])   # (N, 512) f32
    aud_feat = audio_forward(spec, params['audio'])  # (N, 512) f32
    # .squeeze()/.unsqueeze(0) in the reference are identity for N > 1 and
    # restore (1, 512) for N == 1; features are already (N, 512) here.
    wv, bv = params['head_v']
    wa, ba = params['head_a']
    nce_img = head_linear(img_feat, wv, bv, normalize=True)
    nce_aud = head_linear(aud_feat, wa, ba, normalize=True)
    return nce_img, nce_aud


# ----------------------------------------------------------------------------

if __name__ == "__main__":
    key = jax.random.PRNGKey(0)
    k_img, k_spec, k_v, k_a, k_hv, k_ha = jax.random.split(key, 6)

    # Small shapes consistent with the module: video NCDHW, spectrogram NCHW.
    img = jax.random.normal(k_img, (2, 3, 8, 32, 32), jnp.float32)
    spec = jax.random.normal(k_spec, (2, 1, 32, 32), jnp.float32)

    params = {
        'video': init_video_params(k_v),
        'audio': init_audio_params(k_a),
        'head_v': init_linear(k_hv, 256, 512),
        'head_a': init_linear(k_ha, 256, 512),
    }

    nce_img, nce_aud = avmodel_forward(img, spec, params)
    jax.block_until_ready((nce_img, nce_aud))

    assert nce_img.shape == (2, 256) and nce_aud.shape == (2, 256)
    assert bool(jnp.all(jnp.isfinite(nce_img))) and bool(jnp.all(jnp.isfinite(nce_aud)))
    # L2-normalized rows
    assert bool(jnp.allclose(jnp.linalg.norm(nce_img, axis=1), 1.0, atol=1e-4))
    assert bool(jnp.allclose(jnp.linalg.norm(nce_aud, axis=1), 1.0, atol=1e-4))
    print("KERNEL_OK")
</pallas_src>

<mosaic_0001>
module attributes {stable_mosaic.version = 11 : i64} {
  func.func @_fused_mm_kernel(%arg0: i32, %arg1: i32, %arg2: i32, %arg3: memref<512x256xbf16, #tpu.memory_space<vmem>>, %arg4: memref<256x128xbf16, #tpu.memory_space<vmem>>, %arg5: memref<1x128xf32, #tpu.memory_space<vmem>>, %arg6: memref<512x128xbf16, #tpu.memory_space<vmem>>) attributes {dimension_semantics = [#tpu.dimension_semantics<parallel>, #tpu.dimension_semantics<parallel>, #tpu.dimension_semantics<arbitrary>], iteration_bounds = array<i64: 8, 1, 1>, scalar_prefetch = 0 : i64, scratch_operands = 0 : i64, tpu.core_type = #tpu.core_type<tc>, window_params = [{transform_indices = @transform_0, window_bounds = array<i64: 512, 256>}, {transform_indices = @transform_1, window_bounds = array<i64: 256, 128>}, {transform_indices = @transform_2, window_bounds = array<i64: 1, 128>}, {transform_indices = @transform_3, window_bounds = array<i64: 512, 128>}]} {
    %c0 = arith.constant 0 : index
    %c0_0 = arith.constant 0 : index
    %0 = vector.load %arg3[%c0, %c0_0] : memref<512x256xbf16, #tpu.memory_space<vmem>>, vector<512x256xbf16>
    %c0_1 = arith.constant 0 : index
    %c0_2 = arith.constant 0 : index
    %1 = vector.load %arg4[%c0_1, %c0_2] : memref<256x128xbf16, #tpu.memory_space<vmem>>, vector<256x128xbf16>
    %cst = arith.constant dense<0.000000e+00> : vector<512x128xf32>
    %2 = tpu.matmul %0, %1, %cst {dimension_numbers = #tpu.dot_dimension_numbers<[1], [0], [0], [1], [0, 0, 1, 1], [], []>} : vector<512x256xbf16>, vector<256x128xbf16>, vector<512x128xf32> -> vector<512x128xf32>
    %c0_3 = arith.constant 0 : index
    %c0_4 = arith.constant 0 : index
    %3 = vector.load %arg5[%c0_3, %c0_4] : memref<1x128xf32, #tpu.memory_space<vmem>>, vector<1x128xf32>
    %4 = vector.broadcast %3 : vector<1x128xf32> to vector<512x128xf32>
    %5 = arith.addf %2, %4 : vector<512x128xf32>
    %cst_5 = arith.constant 0.000000e+00 : f32
    %6 = vector.broadcast %cst_5 : f32 to vector<512x128xf32>
    %7 = arith.maximumf %5, %6 : vector<512x128xf32>
    %8 = arith.truncf %7 : vector<512x128xf32> to vector<512x128xbf16>
    %c0_6 = arith.constant 0 : index
    %c0_7 = arith.constant 0 : index
    %9 = vector.load %arg6[%c0_6, %c0_7] : memref<512x128xbf16, #tpu.memory_space<vmem>>, vector<512x128xbf16>
    tpu.vector_store %arg6[%c0_6, %c0_7], %8 {strides = array<i32>} : memref<512x128xbf16, #tpu.memory_space<vmem>>, vector<512x128xbf16>,
    return
  }
  func.func @transform_0(%arg0: i32, %arg1: i32, %arg2: i32) -> (i32, i32) {
    %c0_i32 = arith.constant 0 : i32
    return %arg0, %arg2 : i32, i32
  }
  func.func @transform_1(%arg0: i32, %arg1: i32, %arg2: i32) -> (i32, i32) {
    %c0_i32 = arith.constant 0 : i32
    return %arg2, %arg1 : i32, i32
  }
  func.func @transform_2(%arg0: i32, %arg1: i32, %arg2: i32) -> (i32, i32) {
    %c0_i32 = arith.constant 0 : i32
    %c0_i32_0 = arith.constant 0 : i32
    return %c0_i32, %arg1 : i32, i32
  }
  func.func @transform_3(%arg0: i32, %arg1: i32, %arg2: i32) -> (i32, i32) {
    %c0_i32 = arith.constant 0 : i32
    return %arg0, %arg1 : i32, i32
  }
}

</mosaic_0001>

<llo_original>
// kernel: tpu_custom_call.1
$region0: #{tpu_custom_call.1}
  #allocation0 [shape = 'u32[]', space=smem, size = 0x4, offset = 0x4, fixed_abs, tag = 'smem constant byte address 0x4 - core index']
  #allocation1 [shape = 'u32[72,128]{1,0:T(1,128)}', space=vmem, size = 0x9000, scoped, tag = 'internal scratch']
  %s0 = inlined_call_operand.hbm [shape: bf16[4096,256], index: 0, kind: input, shape index: {}]
  %s1 = inlined_call_operand.hbm [shape: bf16[256,128], index: 1, kind: input, shape index: {}]
  %s2 = inlined_call_operand.hbm [shape: f32[1,128], index: 2, kind: input, shape index: {}]
  %s3 = inlined_call_operand.hbm [shape: bf16[4096,128], index: 3, kind: output, shape index: {}]
  %s4 = sld [smem:[#allocation0]]
  $region57: #{tpu_custom_call.1} parent=0
    _
  %s6 = ssub.s32 1, %s4
  %s7 = scalar_select 0, %s6, %s4
  $region1: #{tpu_custom_call.1} parent=0
    #allocation2 [shape = 'u8[524288]{0}', space=vmem, size = 0x80000, scoped, tag = 'input window, operand 0']
    #allocation3 [shape = 's32[2]{0}', space=sflag, size = 0x8, scoped, tag = 'scoped memory for tpu_custom_call.1']
    #allocation4 [shape = 's32[2]{0}', space=sflag, size = 0x8, scoped, tag = 'scoped memory for tpu_custom_call.1']
    #allocation5 [shape = 'u8[65536]{0}', space=vmem, size = 0x10000, scoped, tag = 'input window, operand 1, single buffered']
    #allocation6 [shape = 's32[1]{0}', space=sflag, size = 0x4, scoped, tag = 'scoped memory for tpu_custom_call.1']
    #allocation7 [shape = 'u8[512]{0}', space=vmem, size = 0x400, scoped, tag = 'input window, operand 2, single buffered']
    #allocation8 [shape = 'u8[262144]{0}', space=vmem, size = 0x40000, scoped, tag = 'output window, operand 0']
    %8 = vsyncpa [#allocation3], 0
    %s9 = scalar_lea.sflag [#allocation3], 1
    %10 = vsyncpa %s9, 0
    %11 = vsyncpa [#allocation6], 0
    %12 = vsyncpa [#allocation4], 0
    %s13 = scalar_lea.sflag [#allocation4], 1
    %14 = vsyncpa %s13, 0
    loop: start=0, step=1, limit=10
    $region2: #{tpu_custom_call.1} parent=1 // loop_pre_header
      _
    $region3: #{tpu_custom_call.1} parent=1 // loop_header
      %s16 = sphi 0, %s20
      %p17 = scmp.ge.s32.totalorder %s16, 10
      %s23 = sphi 0, %s42
      %s24 = sphi 0, %s38
      %s25 = sphi 0, %s34
      %s26 = sphi 0, %s23
      %s27 = sphi 0, %s24
      %s28 = sphi 0, %s25
      %s29 = sphi 0, %s26
      %s30 = sphi 0, %s27
      %s31 = sphi 0, %s28
      %s47 = sphi 0, %s49
      %s50 = sphi 0, %s47
      %s51 = sphi 0, %s50
      %s67 = sphi 0, %s51
      %s75 = sphi 0, %s77
      %s78 = sphi 0, %s75
      %s79 = sphi 0, %s78
      %s95 = sphi 0, %s79
      %s101 = sphi 0, %s103
      %s104 = sphi 0, %s101
      %s105 = sphi 0, %s104
      %s121 = sphi 0, %s105
      %s129 = sphi 0, %s131
      %s132 = sphi 0, %s129
      %s133 = sphi 0, %s132
      %s149 = sphi 0, %s133
    $region4: #{tpu_custom_call.1} parent=1 // loop_header_branch
      %19 = sbr.rel (%p17) target = $region8
    $region5: #{tpu_custom_call.1} parent=1 // loop_body
      %s21 = ssub.s32 %s16, 1
      %s22 = ssub.s32 %s16, 2
      %s32 = sadd.s32 1, %s25
      %p33 = scmp.ge.s32.totalorder %s32, 1
      %s34 = scalar_select %p33, 0, %s32
      %s35 = sadd.s32 1, %s24
      %s36 = scalar_select %p33, %s35, %s24
      %p37 = scmp.ge.s32.totalorder %s36, 1
      %s38 = scalar_select %p37, 0, %s36
      %s39 = sadd.s32 1, %s23
      %s40 = scalar_select %p37, %s39, %s23
      %p41 = scmp.ge.s32.totalorder %s40, 8
      %s42 = scalar_select %p41, 0, %s40
      %s43 = ssub.s32 %s23, %s42
      %s44 = ssub.s32 %s25, %s34
      %s45 = sor.u32 %s43, %s44
      %p46 = scmp.eq.s32.totalorder %s45, 0
      %s48 = sadd.s32 %s47, 1
      %s49 = scalar_select %p46, %s47, %s48
      %p52 = pneg %p46
      %p53 = scmp.eq.s32.totalorder %s16, 7
      %p54 = por %p52, %p53
      %p55 = scmp.ne.s32.totalorder %s47, %s50
      %p56 = scmp.eq.s32.totalorder %s16, 0
      %p57 = por %p55, %p56
      %p58 = scmp.ne.s32.totalorder %s47, %s50
      %p59 = scmp.eq.s32.totalorder %s21, 7
      %p60 = por %p58, %p59
      %p61 = scmp.ne.s32.totalorder %s50, %s51
      %p62 = scmp.eq.s32.totalorder %s21, 0
      %p63 = por %p61, %p62
      %p64 = scmp.ne.s32.totalorder %s50, %s51
      %p65 = scmp.eq.s32.totalorder %s22, 7
      %p66 = por %p64, %p65
      %p68 = scmp.ne.s32.totalorder %s51, %s67
      %p69 = scmp.eq.s32.totalorder %s22, 0
      %p70 = por %p68, %p69
      %s71 = ssub.s32 %s25, %s34
      %s72 = ssub.s32 %s24, %s38
      %s73 = sor.u32 %s71, %s72
      %p74 = scmp.eq.s32.totalorder %s73, 0
      %s76 = sadd.s32 %s75, 1
      %s77 = scalar_select %p74, %s75, %s76
      %p80 = pneg %p74
      %p81 = scmp.eq.s32.totalorder %s16, 7
      %p82 = por %p80, %p81
      %p83 = scmp.ne.s32.totalorder %s75, %s78
      %p84 = scmp.eq.s32.totalorder %s16, 0
      %p85 = por %p83, %p84
      %p86 = scmp.ne.s32.totalorder %s75, %s78
      %p87 = scmp.eq.s32.totalorder %s21, 7
      %p88 = por %p86, %p87
      %p89 = scmp.ne.s32.totalorder %s78, %s79
      %p90 = scmp.eq.s32.totalorder %s21, 0
      %p91 = por %p89, %p90
      %p92 = scmp.ne.s32.totalorder %s78, %s79
      %p93 = scmp.eq.s32.totalorder %s22, 7
      %p94 = por %p92, %p93
      %p96 = scmp.ne.s32.totalorder %s79, %s95
      %p97 = scmp.eq.s32.totalorder %s22, 0
      %p98 = por %p96, %p97
      %s99 = ssub.s32 %s24, %s38
      %p100 = scmp.eq.s32.totalorder %s99, 0
      %s102 = sadd.s32 %s101, 1
      %s103 = scalar_select %p100, %s101, %s102
      %p106 = pneg %p100
      %p107 = scmp.eq.s32.totalorder %s16, 7
      %p108 = por %p106, %p107
      %p109 = scmp.ne.s32.totalorder %s101, %s104
      %p110 = scmp.eq.s32.totalorder %s16, 0
      %p111 = por %p109, %p110
      %p112 = scmp.ne.s32.totalorder %s101, %s104
      %p113 = scmp.eq.s32.totalorder %s21, 7
      %p114 = por %p112, %p113
      %p115 = scmp.ne.s32.totalorder %s104, %s105
      %p116 = scmp.eq.s32.totalorder %s21, 0
      %p117 = por %p115, %p116
      %p118 = scmp.ne.s32.totalorder %s104, %s105
      %p119 = scmp.eq.s32.totalorder %s22, 7
      %p120 = por %p118, %p119
      %p122 = scmp.ne.s32.totalorder %s105, %s121
      %p123 = scmp.eq.s32.totalorder %s22, 0
      %p124 = por %p122, %p123
      %s125 = ssub.s32 %s23, %s42
      %s126 = ssub.s32 %s24, %s38
      %s127 = sor.u32 %s125, %s126
      %p128 = scmp.eq.s32.totalorder %s127, 0
      %s130 = sadd.s32 %s129, 1
      %s131 = scalar_select %p128, %s129, %s130
      %p134 = pneg %p128
      %p135 = scmp.eq.s32.totalorder %s16, 7
      %p136 = por %p134, %p135
      %p137 = scmp.ne.s32.totalorder %s129, %s132
      %p138 = scmp.eq.s32.totalorder %s16, 0
      %p139 = por %p137, %p138
      %p140 = scmp.ne.s32.totalorder %s129, %s132
      %p141 = scmp.eq.s32.totalorder %s21, 7
      %p142 = por %p140, %p141
      %p143 = scmp.ne.s32.totalorder %s132, %s133
      %p144 = scmp.eq.s32.totalorder %s21, 0
      %p145 = por %p143, %p144
      %p146 = scmp.ne.s32.totalorder %s132, %s133
      %p147 = scmp.eq.s32.totalorder %s22, 7
      %p148 = por %p146, %p147
      %p150 = scmp.ne.s32.totalorder %s133, %s149
      %p151 = scmp.eq.s32.totalorder %s22, 0
      %p152 = por %p150, %p151
      %p153 = scmp.le.s32.totalorder 1, %s16
      %p154 = scmp.lt.s32.totalorder %s16, 9
      %p155 = pnand %p153, %p154
      %p156 = pneg %p155
      // Predicated region
      $region9: #{tpu_custom_call.1} parent=5 // pred_check
        _
      $region10: #{tpu_custom_call.1} parent=5 // pred_check_branch
        %158 = sbr.rel (%p155) target = $region12
      $region11: #{tpu_custom_call.1} parent=5 // pred_region
        %s159 = ssub.s32 %s16, 1
        // Predicated region
        $region13: #{tpu_custom_call.1} parent=11 // pred_check
          %p160 = pneg %p91
        $region14: #{tpu_custom_call.1} parent=11 // pred_check_branch
          %162 = sbr.rel (%p160) target = $region16
        $region15: #{tpu_custom_call.1} parent=11 // pred_region
          %s163 = smul.u32 32, %s28
          %165 = vsyncadd [#allocation6], 0
          %s166 = sadd.s32 %s27, %s163
          %s167 = smul.addr %s166, 4
          %s168 = scalar_lea.hbm %s1, %s167
          %s169 = sshll.u32 %s168, 4
          %s170 = int_to_ptr.hbm [resolvable:$true] %s169
          %s171 = sshll.u32 [#allocation5], 4
          %s172 = int_to_ptr.vmem [resolvable:$true] %s171
          %177 = dma.hbm_to_vmem [thread:$0]  %s170, 2048, %s172, [#allocation6], 64, 64, 4
        $region16: #{tpu_custom_call.1} parent=11 // pred_fallthru
          _
        // Predicated region
        $region17: #{tpu_custom_call.1} parent=11 // pred_check
          %p178 = pneg %p117
        $region18: #{tpu_custom_call.1} parent=11 // pred_check_branch
          %180 = sbr.rel (%p178) target = $region20
        $region19: #{tpu_custom_call.1} parent=11 // pred_region
          %182 = vsyncadd [#allocation6], 0
          %s183 = scalar_lea.hbm %s2, %s27
          %s185 = sshll.u32 %s183, 4
          %s186 = int_to_ptr.hbm [resolvable:$true] %s185
          %s187 = sshll.u32 [#allocation7], 4
          %s188 = int_to_ptr.vmem [resolvable:$true] %s187
          %190 = dma.hbm_to_vmem [thread:$0]  %s186, 16, %s188, [#allocation6]
        $region20: #{tpu_custom_call.1} parent=11 // pred_fallthru
          _
      $region12: #{tpu_custom_call.1} parent=5 // pred_fallthru
        _
      %p191 = scmp.lt.s32.totalorder %s16, 8
      // Predicated region
      $region21: #{tpu_custom_call.1} parent=5 // pred_check
        %p192 = pneg %p191
      $region22: #{tpu_custom_call.1} parent=5 // pred_check_branch
        %194 = sbr.rel (%p192) target = $region24
      $region23: #{tpu_custom_call.1} parent=5 // pred_region
        // Predicated region
        $region25: #{tpu_custom_call.1} parent=23 // pred_check
          %p195 = pneg %p57
        $region26: #{tpu_custom_call.1} parent=23 // pred_check_branch
          %197 = sbr.rel (%p195) target = $region28
        $region27: #{tpu_custom_call.1} parent=23 // pred_region
          %s198 = sand.u32 %s47, 1
          %s199 = scalar_lea.sflag [#allocation3], %s198
          %s200 = sand.u32 %s47, 1
          %s201 = smul.addr %s200, 512
          %s202 = scalar_lea.vmem [#allocation2], %s201
          %s203 = smul.u32 64, %s23
          %s204 = smul.u32 2, %s25
          %206 = vsyncadd %s199, 0
          %s207 = smul.addr %s203, 2
          %s208 = sadd.s32 %s204, %s207
          %s209 = smul.addr %s208, 4
          %s210 = scalar_lea.hbm %s0, %s209
          %s211 = sshll.u32 %s210, 4
          %s212 = int_to_ptr.hbm [resolvable:$true] %s211
          %s213 = sshll.u32 %s202, 4
          %s214 = int_to_ptr.vmem [resolvable:$true] %s213
          %219 = dma.hbm_to_vmem [thread:$0]  %s212, 8192, %s214, %s199, 128, 128, 8
        $region28: #{tpu_custom_call.1} parent=23 // pred_fallthru
          _
      $region24: #{tpu_custom_call.1} parent=5 // pred_fallthru
        _
      %p220 = scmp.le.s32.totalorder 1, %s16
      %p221 = scmp.lt.s32.totalorder %s16, 9
      %p222 = pnand %p220, %p221
      %p223 = pneg %p222
      // Predicated region
      $region29: #{tpu_custom_call.1} parent=5 // pred_check
        _
      $region30: #{tpu_custom_call.1} parent=5 // pred_check_branch
        %225 = sbr.rel (%p222) target = $region32
      $region31: #{tpu_custom_call.1} parent=5 // pred_region
        %s226 = ssub.s32 %s16, 1
        %s227 = sand.u32 %s50, 1
        %s228 = scalar_lea.sflag [#allocation3], %s227
        %s229 = sand.u32 %s50, 1
        %s230 = smul.addr %s229, 512
        %s231 = scalar_lea.vmem [#allocation2], %s230
        // Predicated region
        $region33: #{tpu_custom_call.1} parent=31 // pred_check
          %p232 = pneg %p63
        $region34: #{tpu_custom_call.1} parent=31 // pred_check_branch
          %234 = sbr.rel (%p232) target = $region36
        $region35: #{tpu_custom_call.1} parent=31 // pred_region
          %236 = dma.done %s228, 8192
        $region36: #{tpu_custom_call.1} parent=31 // pred_fallthru
          _
        // Predicated region
        $region37: #{tpu_custom_call.1} parent=31 // pred_check
          %p237 = pneg %p91
        $region38: #{tpu_custom_call.1} parent=31 // pred_check_branch
          %239 = sbr.rel (%p237) target = $region40
        $region39: #{tpu_custom_call.1} parent=31 // pred_region
          %241 = dma.done [#allocation6], 2048
        $region40: #{tpu_custom_call.1} parent=31 // pred_fallthru
          _
        // Predicated region
        $region41: #{tpu_custom_call.1} parent=31 // pred_check
          %p242 = pneg %p117
        $region42: #{tpu_custom_call.1} parent=31 // pred_check_branch
          %244 = sbr.rel (%p242) target = $region44
        $region43: #{tpu_custom_call.1} parent=31 // pred_region
          %246 = dma.done [#allocation6], 16
        $region44: #{tpu_custom_call.1} parent=31 // pred_fallthru
          _
        %s247 = sand.u32 %s50, 1
        %s248 = scalar_lea.sflag [#allocation3], %s247
        %s249 = sand.u32 %s50, 1
        %s250 = smul.addr %s249, 512
        %s251 = scalar_lea.vmem [#allocation2], %s250
        %p252 = pneg %p63
        %p253 = pneg %p60
        %p254 = pneg %p91
        %p255 = pneg %p88
        %p256 = pneg %p117
        %p257 = pneg %p114
        %p258 = pneg %p145
        %p259 = pneg %p142
        %s260 = sand.u32 %s132, 1
        %s261 = scalar_lea.sflag [#allocation4], %s260
        %s262 = sand.u32 %s132, 1
        %s263 = smul.addr %s262, 256
        %s264 = scalar_lea.vmem [#allocation8], %s263
        %s265 = smul.u32 64, %s26
        %s266 = smul.u32 2, %s28
        %s267 = smul.u32 32, %s28
        %s268 = smul.u32 64, %s26
        %v269 = vld [vmem:[%s231] sm:$0xff]
        %v270 = vld [vmem:[%s231 + $0x8] sm:$0xff]
        %v271 = vld [vmem:[%s231 + $0x10] sm:$0xff]
        %v272 = vld [vmem:[%s231 + $0x18] sm:$0xff]
        %v273 = vld [vmem:[%s231 + $0x20] sm:$0xff]
        %v274 = vld [vmem:[%s231 + $0x28] sm:$0xff]
        %v275 = vld [vmem:[%s231 + $0x30] sm:$0xff]
        %v276 = vld [vmem:[%s231 + $0x38] sm:$0xff]
        %v277 = vld [vmem:[%s231 + $0x40] sm:$0xff]
        %v278 = vld [vmem:[%s231 + $0x48] sm:$0xff]
        %v279 = vld [vmem:[%s231 + $0x50] sm:$0xff]
        %v280 = vld [vmem:[%s231 + $0x58] sm:$0xff]
        %v281 = vld [vmem:[%s231 + $0x60] sm:$0xff]
        %v282 = vld [vmem:[%s231 + $0x68] sm:$0xff]
        %v283 = vld [vmem:[%s231 + $0x70] sm:$0xff]
        %v284 = vld [vmem:[%s231 + $0x78] sm:$0xff]
        %v285 = vld [vmem:[%s231 + $0x80] sm:$0xff]
        %v286 = vld [vmem:[%s231 + $0x88] sm:$0xff]
        %v287 = vld [vmem:[%s231 + $0x90] sm:$0xff]
        %v288 = vld [vmem:[%s231 + $0x98] sm:$0xff]
        %v289 = vld [vmem:[%s231 + $0xa0] sm:$0xff]
        %v290 = vld [vmem:[%s231 + $0xa8] sm:$0xff]
        %v291 = vld [vmem:[%s231 + $0xb0] sm:$0xff]
        %v292 = vld [vmem:[%s231 + $0xb8] sm:$0xff]
        %v293 = vld [vmem:[%s231 + $0xc0] sm:$0xff]
        %v294 = vld [vmem:[%s231 + $0xc8] sm:$0xff]
        %v295 = vld [vmem:[%s231 + $0xd0] sm:$0xff]
        %v296 = vld [vmem:[%s231 + $0xd8] sm:$0xff]
        %v297 = vld [vmem:[%s231 + $0xe0] sm:$0xff]
        %v298 = vld [vmem:[%s231 + $0xe8] sm:$0xff]
        %v299 = vld [vmem:[%s231 + $0xf0] sm:$0xff]
        %v300 = vld [vmem:[%s231 + $0xf8] sm:$0xff]
        %v301 = vld [vmem:[%s231 + $0x100] sm:$0xff]
        %v302 = vld [vmem:[%s231 + $0x108] sm:$0xff]
        %v303 = vld [vmem:[%s231 + $0x110] sm:$0xff]
        %v304 = vld [vmem:[%s231 + $0x118] sm:$0xff]
        %v305 = vld [vmem:[%s231 + $0x120] sm:$0xff]
        %v306 = vld [vmem:[%s231 + $0x128] sm:$0xff]
        %v307 = vld [vmem:[%s231 + $0x130] sm:$0xff]
        %v308 = vld [vmem:[%s231 + $0x138] sm:$0xff]
        %v309 = vld [vmem:[%s231 + $0x140] sm:$0xff]
        %v310 = vld [vmem:[%s231 + $0x148] sm:$0xff]
        %v311 = vld [vmem:[%s231 + $0x150] sm:$0xff]
        %v312 = vld [vmem:[%s231 + $0x158] sm:$0xff]
        %v313 = vld [vmem:[%s231 + $0x160] sm:$0xff]
        %v314 = vld [vmem:[%s231 + $0x168] sm:$0xff]
        %v315 = vld [vmem:[%s231 + $0x170] sm:$0xff]
        %v316 = vld [vmem:[%s231 + $0x178] sm:$0xff]
        %v317 = vld [vmem:[%s231 + $0x180] sm:$0xff]
        %v318 = vld [vmem:[%s231 + $0x188] sm:$0xff]
        %v319 = vld [vmem:[%s231 + $0x190] sm:$0xff]
        %v320 = vld [vmem:[%s231 + $0x198] sm:$0xff]
        %v321 = vld [vmem:[%s231 + $0x1a0] sm:$0xff]
        %v322 = vld [vmem:[%s231 + $0x1a8] sm:$0xff]
        %v323 = vld [vmem:[%s231 + $0x1b0] sm:$0xff]
        %v324 = vld [vmem:[%s231 + $0x1b8] sm:$0xff]
        %v325 = vld [vmem:[%s231 + $0x1c0] sm:$0xff]
        %v326 = vld [vmem:[%s231 + $0x1c8] sm:$0xff]
        %v327 = vld [vmem:[%s231 + $0x1d0] sm:$0xff]
        %v328 = vld [vmem:[%s231 + $0x1d8] sm:$0xff]
        %v329 = vld [vmem:[%s231 + $0x1e0] sm:$0xff]
        %v330 = vld [vmem:[%s231 + $0x1e8] sm:$0xff]
        %v331 = vld [vmem:[%s231 + $0x1f0] sm:$0xff]
        %v332 = vld [vmem:[%s231 + $0x1f8] sm:$0xff]
        %v333 = vld [vmem:[#allocation5] sm:$0xf]
        %v334 = vld [vmem:[#allocation5 + $0x4] sm:$0xf]
        %v335 = vld [vmem:[#allocation5 + $0x8] sm:$0xf]
        %v336 = vld [vmem:[#allocation5 + $0xc] sm:$0xf]
        %v337 = vld [vmem:[#allocation5 + $0x10] sm:$0xf]
        %v338 = vld [vmem:[#allocation5 + $0x14] sm:$0xf]
        %v339 = vld [vmem:[#allocation5 + $0x18] sm:$0xf]
        %v340 = vld [vmem:[#allocation5 + $0x1c] sm:$0xf]
        %v341 = vld [vmem:[#allocation5 + $0x20] sm:$0xf]
        %v342 = vld [vmem:[#allocation5 + $0x24] sm:$0xf]
        %v343 = vld [vmem:[#allocation5 + $0x28] sm:$0xf]
        %v344 = vld [vmem:[#allocation5 + $0x2c] sm:$0xf]
        %v345 = vld [vmem:[#allocation5 + $0x30] sm:$0xf]
        %v346 = vld [vmem:[#allocation5 + $0x34] sm:$0xf]
        %v347 = vld [vmem:[#allocation5 + $0x38] sm:$0xf]
        %v348 = vld [vmem:[#allocation5 + $0x3c] sm:$0xf]
        %v349 = vld [vmem:[#allocation5 + $0x40] sm:$0xf]
        %v350 = vld [vmem:[#allocation5 + $0x44] sm:$0xf]
        %v351 = vld [vmem:[#allocation5 + $0x48] sm:$0xf]
        %v352 = vld [vmem:[#allocation5 + $0x4c] sm:$0xf]
        %v353 = vld [vmem:[#allocation5 + $0x50] sm:$0xf]
        %v354 = vld [vmem:[#allocation5 + $0x54] sm:$0xf]
        %v355 = vld [vmem:[#allocation5 + $0x58] sm:$0xf]
        %v356 = vld [vmem:[#allocation5 + $0x5c] sm:$0xf]
        %v357 = vld [vmem:[#allocation5 + $0x60] sm:$0xf]
        %v358 = vld [vmem:[#allocation5 + $0x64] sm:$0xf]
        %v359 = vld [vmem:[#allocation5 + $0x68] sm:$0xf]
        %v360 = vld [vmem:[#allocation5 + $0x6c] sm:$0xf]
        %v361 = vld [vmem:[#allocation5 + $0x70] sm:$0xf]
        %v362 = vld [vmem:[#allocation5 + $0x74] sm:$0xf]
        %v363 = vld [vmem:[#allocation5 + $0x78] sm:$0xf]
        %v364 = vld [vmem:[#allocation5 + $0x7c] sm:$0xf]
        %v365 = vld [vmem:[#allocation7] sm:$0x1]
        %v367 = vperm.slane %v365, 0
        %v433 = vunpack.c.l.b16 %v269
        %v434 = vunpack.c.h.b16 %v269
        %v435 = vunpack.c.l.b16 %v270
        %v436 = vunpack.c.h.b16 %v270
        %v437 = vunpack.c.l.b16 %v271
        %v438 = vunpack.c.h.b16 %v271
        %v439 = vunpack.c.l.b16 %v272
        %v440 = vunpack.c.h.b16 %v272
        %v441 = vunpack.c.l.b16 %v273
        %v442 = vunpack.c.h.b16 %v273
        %v443 = vunpack.c.l.b16 %v274
        %v444 = vunpack.c.h.b16 %v274
        %v445 = vunpack.c.l.b16 %v275
        %v446 = vunpack.c.h.b16 %v275
        %v447 = vunpack.c.l.b16 %v276
        %v448 = vunpack.c.h.b16 %v276
        %v449 = vunpack.c.l.b16 %v277
        %v450 = vunpack.c.h.b16 %v277
        %v451 = vunpack.c.l.b16 %v278
        %v452 = vunpack.c.h.b16 %v278
        %v453 = vunpack.c.l.b16 %v279
        %v454 = vunpack.c.h.b16 %v279
        %v455 = vunpack.c.l.b16 %v280
        %v456 = vunpack.c.h.b16 %v280
        %v457 = vunpack.c.l.b16 %v281
        %v458 = vunpack.c.h.b16 %v281
        %v459 = vunpack.c.l.b16 %v282
        %v460 = vunpack.c.h.b16 %v282
        %v461 = vunpack.c.l.b16 %v283
        %v462 = vunpack.c.h.b16 %v283
        %v463 = vunpack.c.l.b16 %v284
        %v464 = vunpack.c.h.b16 %v284
        %v465 = vunpack.c.l.b16 %v285
        %v466 = vunpack.c.h.b16 %v285
        %v467 = vunpack.c.l.b16 %v286
        %v468 = vunpack.c.h.b16 %v286
        %v469 = vunpack.c.l.b16 %v287
        %v470 = vunpack.c.h.b16 %v287
        %v471 = vunpack.c.l.b16 %v288
        %v472 = vunpack.c.h.b16 %v288
        %v473 = vunpack.c.l.b16 %v289
        %v474 = vunpack.c.h.b16 %v289
        %v475 = vunpack.c.l.b16 %v290
        %v476 = vunpack.c.h.b16 %v290
        %v477 = vunpack.c.l.b16 %v291
        %v478 = vunpack.c.h.b16 %v291
        %v479 = vunpack.c.l.b16 %v292
        %v480 = vunpack.c.h.b16 %v292
        %v481 = vunpack.c.l.b16 %v293
        %v482 = vunpack.c.h.b16 %v293
        %v483 = vunpack.c.l.b16 %v294
        %v484 = vunpack.c.h.b16 %v294
        %v485 = vunpack.c.l.b16 %v295
        %v486 = vunpack.c.h.b16 %v295
        %v487 = vunpack.c.l.b16 %v296
        %v488 = vunpack.c.h.b16 %v296
        %v489 = vunpack.c.l.b16 %v297
        %v490 = vunpack.c.h.b16 %v297
        %v491 = vunpack.c.l.b16 %v298
        %v492 = vunpack.c.h.b16 %v298
        %v493 = vunpack.c.l.b16 %v299
        %v494 = vunpack.c.h.b16 %v299
        %v495 = vunpack.c.l.b16 %v300
        %v496 = vunpack.c.h.b16 %v300
        %v497 = vunpack.c.l.b16 %v301
        %v498 = vunpack.c.h.b16 %v301
        %v499 = vunpack.c.l.b16 %v302
        %v500 = vunpack.c.h.b16 %v302
        %v501 = vunpack.c.l.b16 %v303
        %v502 = vunpack.c.h.b16 %v303
        %v503 = vunpack.c.l.b16 %v304
        %v504 = vunpack.c.h.b16 %v304
        %v505 = vunpack.c.l.b16 %v305
        %v506 = vunpack.c.h.b16 %v305
        %v507 = vunpack.c.l.b16 %v306
        %v508 = vunpack.c.h.b16 %v306
        %v509 = vunpack.c.l.b16 %v307
        %v510 = vunpack.c.h.b16 %v307
        %v511 = vunpack.c.l.b16 %v308
        %v512 = vunpack.c.h.b16 %v308
        %v513 = vunpack.c.l.b16 %v309
        %v514 = vunpack.c.h.b16 %v309
        %v515 = vunpack.c.l.b16 %v310
        %v516 = vunpack.c.h.b16 %v310
        %v517 = vunpack.c.l.b16 %v311
        %v518 = vunpack.c.h.b16 %v311
        %v519 = vunpack.c.l.b16 %v312
        %v520 = vunpack.c.h.b16 %v312
        %v521 = vunpack.c.l.b16 %v313
        %v522 = vunpack.c.h.b16 %v313
        %v523 = vunpack.c.l.b16 %v314
        %v524 = vunpack.c.h.b16 %v314
        %v525 = vunpack.c.l.b16 %v315
        %v526 = vunpack.c.h.b16 %v315
        %v527 = vunpack.c.l.b16 %v316
        %v528 = vunpack.c.h.b16 %v316
        %v529 = vunpack.c.l.b16 %v317
        %v530 = vunpack.c.h.b16 %v317
        %v531 = vunpack.c.l.b16 %v318
        %v532 = vunpack.c.h.b16 %v318
        %v533 = vunpack.c.l.b16 %v319
        %v534 = vunpack.c.h.b16 %v319
        %v535 = vunpack.c.l.b16 %v320
        %v536 = vunpack.c.h.b16 %v320
        %v537 = vunpack.c.l.b16 %v321
        %v538 = vunpack.c.h.b16 %v321
        %v539 = vunpack.c.l.b16 %v322
        %v540 = vunpack.c.h.b16 %v322
        %v541 = vunpack.c.l.b16 %v323
        %v542 = vunpack.c.h.b16 %v323
        %v543 = vunpack.c.l.b16 %v324
        %v544 = vunpack.c.h.b16 %v324
        %v545 = vunpack.c.l.b16 %v325
        %v546 = vunpack.c.h.b16 %v325
        %v547 = vunpack.c.l.b16 %v326
        %v548 = vunpack.c.h.b16 %v326
        %v549 = vunpack.c.l.b16 %v327
        %v550 = vunpack.c.h.b16 %v327
        %v551 = vunpack.c.l.b16 %v328
        %v552 = vunpack.c.h.b16 %v328
        %v553 = vunpack.c.l.b16 %v329
        %v554 = vunpack.c.h.b16 %v329
        %v555 = vunpack.c.l.b16 %v330
        %v556 = vunpack.c.h.b16 %v330
        %v557 = vunpack.c.l.b16 %v331
        %v558 = vunpack.c.h.b16 %v331
        %v559 = vunpack.c.l.b16 %v332
        %v560 = vunpack.c.h.b16 %v332
        %v561 = vpack.c.b16 %v435, %v433
        %v562 = vpack.c.b16 %v436, %v434
        %v563 = vpack.c.b16 %v439, %v437
        %v564 = vpack.c.b16 %v440, %v438
        %v565 = vpack.c.b16 %v443, %v441
        %v566 = vpack.c.b16 %v444, %v442
        %v567 = vpack.c.b16 %v447, %v445
        %v568 = vpack.c.b16 %v448, %v446
        %v569 = vpack.c.b16 %v451, %v449
        %v570 = vpack.c.b16 %v452, %v450
        %v571 = vpack.c.b16 %v455, %v453
        %v572 = vpack.c.b16 %v456, %v454
        %v573 = vpack.c.b16 %v459, %v457
        %v574 = vpack.c.b16 %v460, %v458
        %v575 = vpack.c.b16 %v463, %v461
        %v576 = vpack.c.b16 %v464, %v462
        %v577 = vpack.c.b16 %v467, %v465
        %v578 = vpack.c.b16 %v468, %v466
        %v579 = vpack.c.b16 %v471, %v469
        %v580 = vpack.c.b16 %v472, %v470
        %v581 = vpack.c.b16 %v475, %v473
        %v582 = vpack.c.b16 %v476, %v474
        %v583 = vpack.c.b16 %v479, %v477
        %v584 = vpack.c.b16 %v480, %v478
        %v585 = vpack.c.b16 %v483, %v481
        %v586 = vpack.c.b16 %v484, %v482
        %v587 = vpack.c.b16 %v487, %v485
        %v588 = vpack.c.b16 %v488, %v486
        %v589 = vpack.c.b16 %v491, %v489
        %v590 = vpack.c.b16 %v492, %v490
        %v591 = vpack.c.b16 %v495, %v493
        %v592 = vpack.c.b16 %v496, %v494
        %v593 = vpack.c.b16 %v499, %v497
        %v594 = vpack.c.b16 %v500, %v498
        %v595 = vpack.c.b16 %v503, %v501
        %v596 = vpack.c.b16 %v504, %v502
        %v597 = vpack.c.b16 %v507, %v505
        %v598 = vpack.c.b16 %v508, %v506
        %v599 = vpack.c.b16 %v511, %v509
        %v600 = vpack.c.b16 %v512, %v510
        %v601 = vpack.c.b16 %v515, %v513
        %v602 = vpack.c.b16 %v516, %v514
        %v603 = vpack.c.b16 %v519, %v517
        %v604 = vpack.c.b16 %v520, %v518
        %v605 = vpack.c.b16 %v523, %v521
        %v606 = vpack.c.b16 %v524, %v522
        %v607 = vpack.c.b16 %v527, %v525
        %v608 = vpack.c.b16 %v528, %v526
        %v609 = vpack.c.b16 %v531, %v529
        %v610 = vpack.c.b16 %v532, %v530
        %v611 = vpack.c.b16 %v535, %v533
        %v612 = vpack.c.b16 %v536, %v534
        %v613 = vpack.c.b16 %v539, %v537
        %v614 = vpack.c.b16 %v540, %v538
        %v615 = vpack.c.b16 %v543, %v541
        %v616 = vpack.c.b16 %v544, %v542
        %v617 = vpack.c.b16 %v547, %v545
        %v618 = vpack.c.b16 %v548, %v546
        %v619 = vpack.c.b16 %v551, %v549
        %v620 = vpack.c.b16 %v552, %v550
        %v621 = vpack.c.b16 %v555, %v553
        %v622 = vpack.c.b16 %v556, %v554
        %v623 = vpack.c.b16 %v559, %v557
        %v624 = vpack.c.b16 %v560, %v558
        %v721 = vunpack.c.l.b16 %v333
        %v722 = vunpack.c.l.b16 %v334
        %v723 = vunpack.c.l.b16 %v335
        %v724 = vunpack.c.l.b16 %v336
        %v725 = vunpack.c.l.b16 %v337
        %v726 = vunpack.c.l.b16 %v338
        %v727 = vunpack.c.l.b16 %v339
        %v728 = vunpack.c.l.b16 %v340
        %v729 = vunpack.c.l.b16 %v341
        %v730 = vunpack.c.l.b16 %v342
        %v731 = vunpack.c.l.b16 %v343
        %v732 = vunpack.c.l.b16 %v344
        %v733 = vunpack.c.l.b16 %v345
        %v734 = vunpack.c.l.b16 %v346
        %v735 = vunpack.c.l.b16 %v347
        %v736 = vunpack.c.l.b16 %v348
        %v737 = vunpack.c.l.b16 %v349
        %v738 = vunpack.c.l.b16 %v350
        %v739 = vunpack.c.l.b16 %v351
        %v740 = vunpack.c.l.b16 %v352
        %v741 = vunpack.c.l.b16 %v353
        %v742 = vunpack.c.l.b16 %v354
        %v743 = vunpack.c.l.b16 %v355
        %v744 = vunpack.c.l.b16 %v356
        %v745 = vunpack.c.l.b16 %v357
        %v746 = vunpack.c.l.b16 %v358
        %v747 = vunpack.c.l.b16 %v359
        %v748 = vunpack.c.l.b16 %v360
        %v749 = vunpack.c.l.b16 %v361
        %v750 = vunpack.c.l.b16 %v362
        %v751 = vunpack.c.l.b16 %v363
        %v752 = vunpack.c.l.b16 %v364
        %v753 = vpack.c.b16 %v722, %v721
        %v754 = vpack.c.b16 %v724, %v723
        %v755 = vpack.c.b16 %v726, %v725
        %v756 = vpack.c.b16 %v728, %v727
        %v757 = vpack.c.b16 %v730, %v729
        %v758 = vpack.c.b16 %v732, %v731
        %v759 = vpack.c.b16 %v734, %v733
        %v760 = vpack.c.b16 %v736, %v735
        %v761 = vpack.c.b16 %v738, %v737
        %v762 = vpack.c.b16 %v740, %v739
        %v763 = vpack.c.b16 %v742, %v741
        %v764 = vpack.c.b16 %v744, %v743
        %v765 = vpack.c.b16 %v746, %v745
        %v766 = vpack.c.b16 %v748, %v747
        %v767 = vpack.c.b16 %v750, %v749
        %v768 = vpack.c.b16 %v752, %v751
        %785 = vmatpush.bf16.msra.mxu0 %v760
        %786 = vmatpush.bf16.msra.mxu0 %v759
        %787 = vmatpush.bf16.msra.mxu0 %v758
        %788 = vmatpush.bf16.msra.mxu0 %v757
        %789 = vmatpush.bf16.msra.mxu0 %v756
        %790 = vmatpush.bf16.msra.mxu0 %v755
        %791 = vmatpush.bf16.msra.mxu0 %v754
        %792 = vmatpush.bf16.msra.mxu0 %v753
        %793 = vmatmul.bf16.gmra.mxu0 %v561
        %v794 = vpop.f32.mrf.mxu0
        %v795 = vadd.f32 %v367, %v794
        %v796 = vpop.f32.mrf.mxu0
        %v797 = vadd.f32 %v367, %v796
        %798 = vmatmul.bf16.gmra.mxu0 %v563
        %v799 = vpop.f32.mrf.mxu0
        %v800 = vadd.f32 %v367, %v799
        %v801 = vpop.f32.mrf.mxu0
        %v802 = vadd.f32 %v367, %v801
        %803 = vmatmul.bf16.gmra.mxu0 %v565
        %v804 = vpop.f32.mrf.mxu0
        %v805 = vadd.f32 %v367, %v804
        %v806 = vpop.f32.mrf.mxu0
        %v807 = vadd.f32 %v367, %v806
        %808 = vmatmul.bf16.gmra.mxu0 %v567
        %v809 = vpop.f32.mrf.mxu0
        %v810 = vadd.f32 %v367, %v809
        %v811 = vpop.f32.mrf.mxu0
        %v812 = vadd.f32 %v367, %v811
        %813 = vmatmul.bf16.gmra.mxu0 %v569
        %v814 = vpop.f32.mrf.mxu0
        %v815 = vadd.f32 %v367, %v814
        %v816 = vpop.f32.mrf.mxu0
        %v817 = vadd.f32 %v367, %v816
        %818 = vmatmul.bf16.gmra.mxu0 %v571
        %v819 = vpop.f32.mrf.mxu0
        %v820 = vadd.f32 %v367, %v819
        %v821 = vpop.f32.mrf.mxu0
        %v822 = vadd.f32 %v367, %v821
        %823 = vmatmul.bf16.gmra.mxu0 %v573
        %v824 = vpop.f32.mrf.mxu0
        %v825 = vadd.f32 %v367, %v824
        %v826 = vpop.f32.mrf.mxu0
        %v827 = vadd.f32 %v367, %v826
        %828 = vmatmul.bf16.gmra.mxu0 %v575
        %v829 = vpop.f32.mrf.mxu0
        %v830 = vadd.f32 %v367, %v829
        %v831 = vpop.f32.mrf.mxu0
        %v832 = vadd.f32 %v367, %v831
        %833 = vmatmul.bf16.gmra.mxu0 %v577
        %v834 = vpop.f32.mrf.mxu0
        %v835 = vadd.f32 %v367, %v834
        %v836 = vpop.f32.mrf.mxu0
        %v837 = vadd.f32 %v367, %v836
        %838 = vmatmul.bf16.gmra.mxu0 %v579
        %v839 = vpop.f32.mrf.mxu0
        %v840 = vadd.f32 %v367, %v839
        %v841 = vpop.f32.mrf.mxu0
        %v842 = vadd.f32 %v367, %v841
        %843 = vmatmul.bf16.gmra.mxu0 %v581
        %v844 = vpop.f32.mrf.mxu0
        %v845 = vadd.f32 %v367, %v844
        %v846 = vpop.f32.mrf.mxu0
        %v847 = vadd.f32 %v367, %v846
        %848 = vmatmul.bf16.gmra.mxu0 %v583
        %v849 = vpop.f32.mrf.mxu0
        %v850 = vadd.f32 %v367, %v849
        %v851 = vpop.f32.mrf.mxu0
        %v852 = vadd.f32 %v367, %v851
        %853 = vmatmul.bf16.gmra.mxu0 %v585
        %v854 = vpop.f32.mrf.mxu0
        %v855 = vadd.f32 %v367, %v854
        %v856 = vpop.f32.mrf.mxu0
        %v857 = vadd.f32 %v367, %v856
        %858 = vmatmul.bf16.gmra.mxu0 %v587
        %v859 = vpop.f32.mrf.mxu0
        %v860 = vadd.f32 %v367, %v859
        %v861 = vpop.f32.mrf.mxu0
        %v862 = vadd.f32 %v367, %v861
        %863 = vmatmul.bf16.gmra.mxu0 %v589
        %v864 = vpop.f32.mrf.mxu0
        %v865 = vadd.f32 %v367, %v864
        %v866 = vpop.f32.mrf.mxu0
        %v867 = vadd.f32 %v367, %v866
        %868 = vmatmul.bf16.gmra.mxu0 %v591
        %v869 = vpop.f32.mrf.mxu0
        %v870 = vadd.f32 %v367, %v869
        %v871 = vpop.f32.mrf.mxu0
        %v872 = vadd.f32 %v367, %v871
        %873 = vmatmul.bf16.gmra.mxu0 %v593
        %v874 = vpop.f32.mrf.mxu0
        %v875 = vadd.f32 %v367, %v874
        %v876 = vpop.f32.mrf.mxu0
        %v877 = vadd.f32 %v367, %v876
        %878 = vmatmul.bf16.gmra.mxu0 %v595
        %v879 = vpop.f32.mrf.mxu0
        %v880 = vadd.f32 %v367, %v879
        %v881 = vpop.f32.mrf.mxu0
        %v882 = vadd.f32 %v367, %v881
        %883 = vmatmul.bf16.gmra.mxu0 %v597
        %v884 = vpop.f32.mrf.mxu0
        %v885 = vadd.f32 %v367, %v884
        %v886 = vpop.f32.mrf.mxu0
        %v887 = vadd.f32 %v367, %v886
        %888 = vmatmul.bf16.gmra.mxu0 %v599
        %v889 = vpop.f32.mrf.mxu0
        %v890 = vadd.f32 %v367, %v889
        %v891 = vpop.f32.mrf.mxu0
        %v892 = vadd.f32 %v367, %v891
        %893 = vmatmul.bf16.gmra.mxu0 %v601
        %v894 = vpop.f32.mrf.mxu0
        %v895 = vadd.f32 %v367, %v894
        %v896 = vpop.f32.mrf.mxu0
        %v897 = vadd.f32 %v367, %v896
        %898 = vmatmul.bf16.gmra.mxu0 %v603
        %v899 = vpop.f32.mrf.mxu0
        %v900 = vadd.f32 %v367, %v899
        %v901 = vpop.f32.mrf.mxu0
        %v902 = vadd.f32 %v367, %v901
        %903 = vmatmul.bf16.gmra.mxu0 %v605
        %v904 = vpop.f32.mrf.mxu0
        %v905 = vadd.f32 %v367, %v904
        %v906 = vpop.f32.mrf.mxu0
        %v907 = vadd.f32 %v367, %v906
        %908 = vmatmul.bf16.gmra.mxu0 %v607
        %v909 = vpop.f32.mrf.mxu0
        %v910 = vadd.f32 %v367, %v909
        %v911 = vpop.f32.mrf.mxu0
        %v912 = vadd.f32 %v367, %v911
        %913 = vmatmul.bf16.gmra.mxu0 %v609
        %v914 = vpop.f32.mrf.mxu0
        %v915 = vadd.f32 %v367, %v914
        %v916 = vpop.f32.mrf.mxu0
        %v917 = vadd.f32 %v367, %v916
        %918 = vmatmul.bf16.gmra.mxu0 %v611
        %v919 = vpop.f32.mrf.mxu0
        %v920 = vadd.f32 %v367, %v919
        %v921 = vpop.f32.mrf.mxu0
        %v922 = vadd.f32 %v367, %v921
        %923 = vmatmul.bf16.gmra.mxu0 %v613
        %v924 = vpop.f32.mrf.mxu0
        %v925 = vadd.f32 %v367, %v924
        %v926 = vpop.f32.mrf.mxu0
        %v927 = vadd.f32 %v367, %v926
        %928 = vmatmul.bf16.gmra.mxu0 %v615
        %v929 = vpop.f32.mrf.mxu0
        %v930 = vadd.f32 %v367, %v929
        %v931 = vpop.f32.mrf.mxu0
        %v932 = vadd.f32 %v367, %v931
        %933 = vmatmul.bf16.gmra.mxu0 %v617
        %v934 = vpop.f32.mrf.mxu0
        %v935 = vadd.f32 %v367, %v934
        %v936 = vpop.f32.mrf.mxu0
        %v937 = vadd.f32 %v367, %v936
        %938 = vmatmul.bf16.gmra.mxu0 %v619
        %v939 = vpop.f32.mrf.mxu0
        %v940 = vadd.f32 %v367, %v939
        %v941 = vpop.f32.mrf.mxu0
        %v942 = vadd.f32 %v367, %v941
        %943 = vmatmul.bf16.gmra.mxu0 %v621
        %v944 = vpop.f32.mrf.mxu0
        %v945 = vadd.f32 %v367, %v944
        %v946 = vpop.f32.mrf.mxu0
        %v947 = vadd.f32 %v367, %v946
        %948 = vmatmul.bf16.gmra.mxu0 %v623
        %v949 = vpop.f32.mrf.mxu0
        %v950 = vadd.f32 %v367, %v949
        %v951 = vpop.f32.mrf.mxu0
        %v952 = vadd.f32 %v367, %v951
        %953 = vdwg.mxu0
        %954 = vmatpush.bf16.msra.mxu0 %v768
        %955 = vmatpush.bf16.msra.mxu0 %v767
        %956 = vmatpush.bf16.msra.mxu0 %v766
        %957 = vmatpush.bf16.msra.mxu0 %v765
        %958 = vmatpush.bf16.msra.mxu0 %v764
        %959 = vmatpush.bf16.msra.mxu0 %v763
        %960 = vmatpush.bf16.msra.mxu0 %v762
        %961 = vmatpush.bf16.msra.mxu0 %v761
        %962 = vmatmul.bf16.gmra.mxu0 %v562
        %v963 = vpop.f32.mrf.mxu0
        %v964 = vadd.f32 %v795, %v963
        %v965 = vpop.f32.mrf.mxu0
        %v966 = vadd.f32 %v797, %v965
        %967 = vmatmul.bf16.gmra.mxu0 %v564
        %v968 = vpop.f32.mrf.mxu0
        %v969 = vadd.f32 %v800, %v968
        %v970 = vpop.f32.mrf.mxu0
        %v971 = vadd.f32 %v802, %v970
        %972 = vmatmul.bf16.gmra.mxu0 %v566
        %v973 = vpop.f32.mrf.mxu0
        %v974 = vadd.f32 %v805, %v973
        %v975 = vpop.f32.mrf.mxu0
        %v976 = vadd.f32 %v807, %v975
        %977 = vmatmul.bf16.gmra.mxu0 %v568
        %v978 = vpop.f32.mrf.mxu0
        %v979 = vadd.f32 %v810, %v978
        %v980 = vpop.f32.mrf.mxu0
        %v981 = vadd.f32 %v812, %v980
        %982 = vmatmul.bf16.gmra.mxu0 %v570
        %v983 = vpop.f32.mrf.mxu0
        %v984 = vadd.f32 %v815, %v983
        %v985 = vpop.f32.mrf.mxu0
        %v986 = vadd.f32 %v817, %v985
        %987 = vmatmul.bf16.gmra.mxu0 %v572
        %v988 = vpop.f32.mrf.mxu0
        %v989 = vadd.f32 %v820, %v988
        %v990 = vpop.f32.mrf.mxu0
        %v991 = vadd.f32 %v822, %v990
        %992 = vmatmul.bf16.gmra.mxu0 %v574
        %v993 = vpop.f32.mrf.mxu0
        %v994 = vadd.f32 %v825, %v993
        %v995 = vpop.f32.mrf.mxu0
        %v996 = vadd.f32 %v827, %v995
        %997 = vmatmul.bf16.gmra.mxu0 %v576
        %v998 = vpop.f32.mrf.mxu0
        %v999 = vadd.f32 %v830, %v998
        %v1000 = vpop.f32.mrf.mxu0
        %v1001 = vadd.f32 %v832, %v1000
        %1002 = vmatmul.bf16.gmra.mxu0 %v578
        %v1003 = vpop.f32.mrf.mxu0
        %v1004 = vadd.f32 %v835, %v1003
        %v1005 = vpop.f32.mrf.mxu0
        %v1006 = vadd.f32 %v837, %v1005
        %1007 = vmatmul.bf16.gmra.mxu0 %v580
        %v1008 = vpop.f32.mrf.mxu0
        %v1009 = vadd.f32 %v840, %v1008
        %v1010 = vpop.f32.mrf.mxu0
        %v1011 = vadd.f32 %v842, %v1010
        %1012 = vmatmul.bf16.gmra.mxu0 %v582
        %v1013 = vpop.f32.mrf.mxu0
        %v1014 = vadd.f32 %v845, %v1013
        %v1015 = vpop.f32.mrf.mxu0
        %v1016 = vadd.f32 %v847, %v1015
        %1017 = vmatmul.bf16.gmra.mxu0 %v584
        %v1018 = vpop.f32.mrf.mxu0
        %v1019 = vadd.f32 %v850, %v1018
        %v1020 = vpop.f32.mrf.mxu0
        %v1021 = vadd.f32 %v852, %v1020
        %1022 = vmatmul.bf16.gmra.mxu0 %v586
        %v1023 = vpop.f32.mrf.mxu0
        %v1024 = vadd.f32 %v855, %v1023
        %v1025 = vpop.f32.mrf.mxu0
        %v1026 = vadd.f32 %v857, %v1025
        %1027 = vmatmul.bf16.gmra.mxu0 %v588
        %v1028 = vpop.f32.mrf.mxu0
        %v1029 = vadd.f32 %v860, %v1028
        %v1030 = vpop.f32.mrf.mxu0
        %v1031 = vadd.f32 %v862, %v1030
        %1032 = vmatmul.bf16.gmra.mxu0 %v590
        %v1033 = vpop.f32.mrf.mxu0
        %v1034 = vadd.f32 %v865, %v1033
        %v1035 = vpop.f32.mrf.mxu0
        %v1036 = vadd.f32 %v867, %v1035
        %1037 = vmatmul.bf16.gmra.mxu0 %v592
        %v1038 = vpop.f32.mrf.mxu0
        %v1039 = vadd.f32 %v870, %v1038
        %v1040 = vpop.f32.mrf.mxu0
        %v1041 = vadd.f32 %v872, %v1040
        %1042 = vmatmul.bf16.gmra.mxu0 %v594
        %v1043 = vpop.f32.mrf.mxu0
        %v1044 = vadd.f32 %v875, %v1043
        %v1045 = vpop.f32.mrf.mxu0
        %v1046 = vadd.f32 %v877, %v1045
        %1047 = vmatmul.bf16.gmra.mxu0 %v596
        %v1048 = vpop.f32.mrf.mxu0
        %v1049 = vadd.f32 %v880, %v1048
        %v1050 = vpop.f32.mrf.mxu0
        %v1051 = vadd.f32 %v882, %v1050
        %1052 = vmatmul.bf16.gmra.mxu0 %v598
        %v1053 = vpop.f32.mrf.mxu0
        %v1054 = vadd.f32 %v885, %v1053
        %v1055 = vpop.f32.mrf.mxu0
        %v1056 = vadd.f32 %v887, %v1055
        %1057 = vmatmul.bf16.gmra.mxu0 %v600
        %v1058 = vpop.f32.mrf.mxu0
        %v1059 = vadd.f32 %v890, %v1058
        %v1060 = vpop.f32.mrf.mxu0
        %v1061 = vadd.f32 %v892, %v1060
        %1062 = vmatmul.bf16.gmra.mxu0 %v602
        %v1063 = vpop.f32.mrf.mxu0
        %v1064 = vadd.f32 %v895, %v1063
        %v1065 = vpop.f32.mrf.mxu0
        %v1066 = vadd.f32 %v897, %v1065
        %1067 = vmatmul.bf16.gmra.mxu0 %v604
        %v1068 = vpop.f32.mrf.mxu0
        %v1069 = vadd.f32 %v900, %v1068
        %v1070 = vpop.f32.mrf.mxu0
        %v1071 = vadd.f32 %v902, %v1070
        %1072 = vmatmul.bf16.gmra.mxu0 %v606
        %v1073 = vpop.f32.mrf.mxu0
        %v1074 = vadd.f32 %v905, %v1073
        %v1075 = vpop.f32.mrf.mxu0
        %v1076 = vadd.f32 %v907, %v1075
        %1077 = vmatmul.bf16.gmra.mxu0 %v608
        %v1078 = vpop.f32.mrf.mxu0
        %v1079 = vadd.f32 %v910, %v1078
        %v1080 = vpop.f32.mrf.mxu0
        %v1081 = vadd.f32 %v912, %v1080
        %1082 = vmatmul.bf16.gmra.mxu0 %v610
        %v1083 = vpop.f32.mrf.mxu0
        %v1084 = vadd.f32 %v915, %v1083
        %v1085 = vpop.f32.mrf.mxu0
        %v1086 = vadd.f32 %v917, %v1085
        %1087 = vmatmul.bf16.gmra.mxu0 %v612
        %v1088 = vpop.f32.mrf.mxu0
        %v1089 = vadd.f32 %v920, %v1088
        %v1090 = vpop.f32.mrf.mxu0
        %v1091 = vadd.f32 %v922, %v1090
        %1092 = vmatmul.bf16.gmra.mxu0 %v614
        %v1093 = vpop.f32.mrf.mxu0
        %v1094 = vadd.f32 %v925, %v1093
        %v1095 = vpop.f32.mrf.mxu0
        %v1096 = vadd.f32 %v927, %v1095
        %1097 = vmatmul.bf16.gmra.mxu0 %v616
        %v1098 = vpop.f32.mrf.mxu0
        %v1099 = vadd.f32 %v930, %v1098
        %v1100 = vpop.f32.mrf.mxu0
        %v1101 = vadd.f32 %v932, %v1100
        %1102 = vmatmul.bf16.gmra.mxu0 %v618
        %v1103 = vpop.f32.mrf.mxu0
        %v1104 = vadd.f32 %v935, %v1103
        %v1105 = vpop.f32.mrf.mxu0
        %v1106 = vadd.f32 %v937, %v1105
        %1107 = vmatmul.bf16.gmra.mxu0 %v620
        %v1108 = vpop.f32.mrf.mxu0
        %v1109 = vadd.f32 %v940, %v1108
        %v1110 = vpop.f32.mrf.mxu0
        %v1111 = vadd.f32 %v942, %v1110
        %1112 = vmatmul.bf16.gmra.mxu0 %v622
        %v1113 = vpop.f32.mrf.mxu0
        %v1114 = vadd.f32 %v945, %v1113
        %v1115 = vpop.f32.mrf.mxu0
        %v1116 = vadd.f32 %v947, %v1115
        %1117 = vmatmul.bf16.gmra.mxu0 %v624
        %v1118 = vpop.f32.mrf.mxu0
        %v1119 = vadd.f32 %v950, %v1118
        %v1120 = vpop.f32.mrf.mxu0
        %v1121 = vadd.f32 %v952, %v1120
        %1122 = vdwg.mxu0
        %v1123 = vmax.f32 %v964, 0.0
        %v1124 = vmax.f32 %v966, 0.0
        %v1125 = vmax.f32 %v969, 0.0
        %v1126 = vmax.f32 %v971, 0.0
        %v1127 = vmax.f32 %v974, 0.0
        %v1128 = vmax.f32 %v976, 0.0
        %v1129 = vmax.f32 %v979, 0.0
        %v1130 = vmax.f32 %v981, 0.0
        %v1131 = vmax.f32 %v984, 0.0
        %v1132 = vmax.f32 %v986, 0.0
        %v1133 = vmax.f32 %v989, 0.0
        %v1134 = vmax.f32 %v991, 0.0
        %v1135 = vmax.f32 %v994, 0.0
        %v1136 = vmax.f32 %v996, 0.0
        %v1137 = vmax.f32 %v999, 0.0
        %v1138 = vmax.f32 %v1001, 0.0
        %v1139 = vmax.f32 %v1004, 0.0
        %v1140 = vmax.f32 %v1006, 0.0
        %v1141 = vmax.f32 %v1009, 0.0
        %v1142 = vmax.f32 %v1011, 0.0
        %v1143 = vmax.f32 %v1014, 0.0
        %v1144 = vmax.f32 %v1016, 0.0
        %v1145 = vmax.f32 %v1019, 0.0
        %v1146 = vmax.f32 %v1021, 0.0
        %v1147 = vmax.f32 %v1024, 0.0
        %v1148 = vmax.f32 %v1026, 0.0
        %v1149 = vmax.f32 %v1029, 0.0
        %v1150 = vmax.f32 %v1031, 0.0
        %v1151 = vmax.f32 %v1034, 0.0
        %v1152 = vmax.f32 %v1036, 0.0
        %v1153 = vmax.f32 %v1039, 0.0
        %v1154 = vmax.f32 %v1041, 0.0
        %v1155 = vmax.f32 %v1044, 0.0
        %v1156 = vmax.f32 %v1046, 0.0
        %v1157 = vmax.f32 %v1049, 0.0
        %v1158 = vmax.f32 %v1051, 0.0
        %v1159 = vmax.f32 %v1054, 0.0
        %v1160 = vmax.f32 %v1056, 0.0
        %v1161 = vmax.f32 %v1059, 0.0
        %v1162 = vmax.f32 %v1061, 0.0
        %v1163 = vmax.f32 %v1064, 0.0
        %v1164 = vmax.f32 %v1066, 0.0
        %v1165 = vmax.f32 %v1069, 0.0
        %v1166 = vmax.f32 %v1071, 0.0
        %v1167 = vmax.f32 %v1074, 0.0
        %v1168 = vmax.f32 %v1076, 0.0
        %v1169 = vmax.f32 %v1079, 0.0
        %v1170 = vmax.f32 %v1081, 0.0
        %v1171 = vmax.f32 %v1084, 0.0
        %v1172 = vmax.f32 %v1086, 0.0
        %v1173 = vmax.f32 %v1089, 0.0
        %v1174 = vmax.f32 %v1091, 0.0
        %v1175 = vmax.f32 %v1094, 0.0
        %v1176 = vmax.f32 %v1096, 0.0
        %v1177 = vmax.f32 %v1099, 0.0
        %v1178 = vmax.f32 %v1101, 0.0
        %v1179 = vmax.f32 %v1104, 0.0
        %v1180 = vmax.f32 %v1106, 0.0
        %v1181 = vmax.f32 %v1109, 0.0
        %v1182 = vmax.f32 %v1111, 0.0
        %v1183 = vmax.f32 %v1114, 0.0
        %v1184 = vmax.f32 %v1116, 0.0
        %v1185 = vmax.f32 %v1119, 0.0
        %v1186 = vmax.f32 %v1121, 0.0
        %v1187 = vpack.c.bf16 %v1123, %v1123
        %v1188 = vpack.c.bf16 %v1124, %v1124
        %v1189 = vpack.c.bf16 %v1125, %v1125
        %v1190 = vpack.c.bf16 %v1126, %v1126
        %v1191 = vpack.c.bf16 %v1127, %v1127
        %v1192 = vpack.c.bf16 %v1128, %v1128
        %v1193 = vpack.c.bf16 %v1129, %v1129
        %v1194 = vpack.c.bf16 %v1130, %v1130
        %v1195 = vpack.c.bf16 %v1131, %v1131
        %v1196 = vpack.c.bf16 %v1132, %v1132
        %v1197 = vpack.c.bf16 %v1133, %v1133
        %v1198 = vpack.c.bf16 %v1134, %v1134
        %v1199 = vpack.c.bf16 %v1135, %v1135
        %v1200 = vpack.c.bf16 %v1136, %v1136
        %v1201 = vpack.c.bf16 %v1137, %v1137
        %v1202 = vpack.c.bf16 %v1138, %v1138
        %v1203 = vpack.c.bf16 %v1139, %v1139
        %v1204 = vpack.c.bf16 %v1140, %v1140
        %v1205 = vpack.c.bf16 %v1141, %v1141
        %v1206 = vpack.c.bf16 %v1142, %v1142
        %v1207 = vpack.c.bf16 %v1143, %v1143
        %v1208 = vpack.c.bf16 %v1144, %v1144
        %v1209 = vpack.c.bf16 %v1145, %v1145
        %v1210 = vpack.c.bf16 %v1146, %v1146
        %v1211 = vpack.c.bf16 %v1147, %v1147
        %v1212 = vpack.c.bf16 %v1148, %v1148
        %v1213 = vpack.c.bf16 %v1149, %v1149
        %v1214 = vpack.c.bf16 %v1150, %v1150
        %v1215 = vpack.c.bf16 %v1151, %v1151
        %v1216 = vpack.c.bf16 %v1152, %v1152
        %v1217 = vpack.c.bf16 %v1153, %v1153
        %v1218 = vpack.c.bf16 %v1154, %v1154
        %v1219 = vpack.c.bf16 %v1155, %v1155
        %v1220 = vpack.c.bf16 %v1156, %v1156
        %v1221 = vpack.c.bf16 %v1157, %v1157
        %v1222 = vpack.c.bf16 %v1158, %v1158
        %v1223 = vpack.c.bf16 %v1159, %v1159
        %v1224 = vpack.c.bf16 %v1160, %v1160
        %v1225 = vpack.c.bf16 %v1161, %v1161
        %v1226 = vpack.c.bf16 %v1162, %v1162
        %v1227 = vpack.c.bf16 %v1163, %v1163
        %v1228 = vpack.c.bf16 %v1164, %v1164
        %v1229 = vpack.c.bf16 %v1165, %v1165
        %v1230 = vpack.c.bf16 %v1166, %v1166
        %v1231 = vpack.c.bf16 %v1167, %v1167
        %v1232 = vpack.c.bf16 %v1168, %v1168
        %v1233 = vpack.c.bf16 %v1169, %v1169
        %v1234 = vpack.c.bf16 %v1170, %v1170
        %v1235 = vpack.c.bf16 %v1171, %v1171
        %v1236 = vpack.c.bf16 %v1172, %v1172
        %v1237 = vpack.c.bf16 %v1173, %v1173
        %v1238 = vpack.c.bf16 %v1174, %v1174
        %v1239 = vpack.c.bf16 %v1175, %v1175
        %v1240 = vpack.c.bf16 %v1176, %v1176
        %v1241 = vpack.c.bf16 %v1177, %v1177
        %v1242 = vpack.c.bf16 %v1178, %v1178
        %v1243 = vpack.c.bf16 %v1179, %v1179
        %v1244 = vpack.c.bf16 %v1180, %v1180
        %v1245 = vpack.c.bf16 %v1181, %v1181
        %v1246 = vpack.c.bf16 %v1182, %v1182
        %v1247 = vpack.c.bf16 %v1183, %v1183
        %v1248 = vpack.c.bf16 %v1184, %v1184
        %v1249 = vpack.c.bf16 %v1185, %v1185
        %v1250 = vpack.c.bf16 %v1186, %v1186
        %1251 = vst [vmem:[%s264] sm:$0xf] %v1187
        %1252 = vst [vmem:[%s264 + $0x4] sm:$0xf] %v1188
        %1253 = vst [vmem:[%s264 + $0x8] sm:$0xf] %v1189
        %1254 = vst [vmem:[%s264 + $0xc] sm:$0xf] %v1190
        %1255 = vst [vmem:[%s264 + $0x10] sm:$0xf] %v1191
        %1256 = vst [vmem:[%s264 + $0x14] sm:$0xf] %v1192
        %1257 = vst [vmem:[%s264 + $0x18] sm:$0xf] %v1193
        %1258 = vst [vmem:[%s264 + $0x1c] sm:$0xf] %v1194
        %1259 = vst [vmem:[%s264 + $0x20] sm:$0xf] %v1195
        %1260 = vst [vmem:[%s264 + $0x24] sm:$0xf] %v1196
        %1261 = vst [vmem:[%s264 + $0x28] sm:$0xf] %v1197
        %1262 = vst [vmem:[%s264 + $0x2c] sm:$0xf] %v1198
        %1263 = vst [vmem:[%s264 + $0x30] sm:$0xf] %v1199
        %1264 = vst [vmem:[%s264 + $0x34] sm:$0xf] %v1200
        %1265 = vst [vmem:[%s264 + $0x38] sm:$0xf] %v1201
        %1266 = vst [vmem:[%s264 + $0x3c] sm:$0xf] %v1202
        %1267 = vst [vmem:[%s264 + $0x40] sm:$0xf] %v1203
        %1268 = vst [vmem:[%s264 + $0x44] sm:$0xf] %v1204
        %1269 = vst [vmem:[%s264 + $0x48] sm:$0xf] %v1205
        %1270 = vst [vmem:[%s264 + $0x4c] sm:$0xf] %v1206
        %1271 = vst [vmem:[%s264 + $0x50] sm:$0xf] %v1207
        %1272 = vst [vmem:[%s264 + $0x54] sm:$0xf] %v1208
        %1273 = vst [vmem:[%s264 + $0x58] sm:$0xf] %v1209
        %1274 = vst [vmem:[%s264 + $0x5c] sm:$0xf] %v1210
        %1275 = vst [vmem:[%s264 + $0x60] sm:$0xf] %v1211
        %1276 = vst [vmem:[%s264 + $0x64] sm:$0xf] %v1212
        %1277 = vst [vmem:[%s264 + $0x68] sm:$0xf] %v1213
        %1278 = vst [vmem:[%s264 + $0x6c] sm:$0xf] %v1214
        %1279 = vst [vmem:[%s264 + $0x70] sm:$0xf] %v1215
        %1280 = vst [vmem:[%s264 + $0x74] sm:$0xf] %v1216
        %1281 = vst [vmem:[%s264 + $0x78] sm:$0xf] %v1217
        %1282 = vst [vmem:[%s264 + $0x7c] sm:$0xf] %v1218
        %1283 = vst [vmem:[%s264 + $0x80] sm:$0xf] %v1219
        %1284 = vst [vmem:[%s264 + $0x84] sm:$0xf] %v1220
        %1285 = vst [vmem:[%s264 + $0x88] sm:$0xf] %v1221
        %1286 = vst [vmem:[%s264 + $0x8c] sm:$0xf] %v1222
        %1287 = vst [vmem:[%s264 + $0x90] sm:$0xf] %v1223
        %1288 = vst [vmem:[%s264 + $0x94] sm:$0xf] %v1224
        %1289 = vst [vmem:[%s264 + $0x98] sm:$0xf] %v1225
        %1290 = vst [vmem:[%s264 + $0x9c] sm:$0xf] %v1226
        %1291 = vst [vmem:[%s264 + $0xa0] sm:$0xf] %v1227
        %1292 = vst [vmem:[%s264 + $0xa4] sm:$0xf] %v1228
        %1293 = vst [vmem:[%s264 + $0xa8] sm:$0xf] %v1229
        %1294 = vst [vmem:[%s264 + $0xac] sm:$0xf] %v1230
        %1295 = vst [vmem:[%s264 + $0xb0] sm:$0xf] %v1231
        %1296 = vst [vmem:[%s264 + $0xb4] sm:$0xf] %v1232
        %1297 = vst [vmem:[%s264 + $0xb8] sm:$0xf] %v1233
        %1298 = vst [vmem:[%s264 + $0xbc] sm:$0xf] %v1234
        %1299 = vst [vmem:[%s264 + $0xc0] sm:$0xf] %v1235
        %1300 = vst [vmem:[%s264 + $0xc4] sm:$0xf] %v1236
        %1301 = vst [vmem:[%s264 + $0xc8] sm:$0xf] %v1237
        %1302 = vst [vmem:[%s264 + $0xcc] sm:$0xf] %v1238
        %1303 = vst [vmem:[%s264 + $0xd0] sm:$0xf] %v1239
        %1304 = vst [vmem:[%s264 + $0xd4] sm:$0xf] %v1240
        %1305 = vst [vmem:[%s264 + $0xd8] sm:$0xf] %v1241
        %1306 = vst [vmem:[%s264 + $0xdc] sm:$0xf] %v1242
        %1307 = vst [vmem:[%s264 + $0xe0] sm:$0xf] %v1243
        %1308 = vst [vmem:[%s264 + $0xe4] sm:$0xf] %v1244
        %1309 = vst [vmem:[%s264 + $0xe8] sm:$0xf] %v1245
        %1310 = vst [vmem:[%s264 + $0xec] sm:$0xf] %v1246
        %1311 = vst [vmem:[%s264 + $0xf0] sm:$0xf] %v1247
        %1312 = vst [vmem:[%s264 + $0xf4] sm:$0xf] %v1248
        %1313 = vst [vmem:[%s264 + $0xf8] sm:$0xf] %v1249
        %1314 = vst [vmem:[%s264 + $0xfc] sm:$0xf] %v1250
        %s1315 = sand.u32 %s132, 1
        %s1316 = scalar_lea.sflag [#allocation4], %s1315
        %s1317 = sand.u32 %s132, 1
        %s1318 = smul.addr %s1317, 256
        %s1319 = scalar_lea.vmem [#allocation8], %s1318
        // Predicated region
        $region45: #{tpu_custom_call.1} parent=31 // pred_check
          %p1320 = pneg %p142
        $region46: #{tpu_custom_call.1} parent=31 // pred_check_branch
          %1322 = sbr.rel (%p1320) target = $region48
        $region47: #{tpu_custom_call.1} parent=31 // pred_region
          %s1323 = smul.u32 64, %s26
          %1325 = vsyncadd %s1316, 0
          %s1326 = sadd.s32 %s27, %s1323
          %s1327 = smul.addr %s1326, 4
          %s1328 = scalar_lea.hbm %s3, %s1327
          %s1329 = sshll.u32 %s1319, 4
          %s1330 = int_to_ptr.vmem [resolvable:$true] %s1329
          %s1331 = sshll.u32 %s1328, 4
          %s1332 = int_to_ptr.hbm [resolvable:$true] %s1331
          %1337 = dma.vmem_to_hbm [thread:$0]  %s1330, 4096, %s1332, %s1316, 64, 64, 4
        $region48: #{tpu_custom_call.1} parent=31 // pred_fallthru
          _
      $region32: #{tpu_custom_call.1} parent=5 // pred_fallthru
        _
      %p1338 = scmp.le.s32.totalorder 2, %s16
      // Predicated region
      $region49: #{tpu_custom_call.1} parent=5 // pred_check
        %p1339 = pneg %p1338
      $region50: #{tpu_custom_call.1} parent=5 // pred_check_branch
        %1341 = sbr.rel (%p1339) target = $region52
      $region51: #{tpu_custom_call.1} parent=5 // pred_region
        %s1342 = ssub.s32 %s16, 2
        // Predicated region
        $region53: #{tpu_custom_call.1} parent=51 // pred_check
          %p1343 = pneg %p148
        $region54: #{tpu_custom_call.1} parent=51 // pred_check_branch
          %1345 = sbr.rel (%p1343) target = $region56
        $region55: #{tpu_custom_call.1} parent=51 // pred_region
          %s1346 = sand.u32 %s133, 1
          %s1347 = scalar_lea.sflag [#allocation4], %s1346
          %s1348 = sand.u32 %s133, 1
          %s1349 = smul.addr %s1348, 256
          %s1350 = scalar_lea.vmem [#allocation8], %s1349
          %1352 = dma.done %s1347, 4096
        $region56: #{tpu_custom_call.1} parent=51 // pred_fallthru
          _
      $region52: #{tpu_custom_call.1} parent=5 // pred_fallthru
        _
    $region6: #{tpu_custom_call.1} parent=1 // loop_footer
      %s20 = sadd.s32 1, %s16
    $region7: #{tpu_custom_call.1} parent=1 // loop_footer_branch
      %15 = sbr.rel target = $region3
    $region8: #{tpu_custom_call.1} parent=1 // loop_exit
      _
    %1353 = vsyncpa [#allocation3], 1
    %s1354 = scalar_lea.sflag [#allocation3], 1
    %1355 = vsyncpa %s1354, 1
    %1356 = vsyncpa [#allocation6], 1
    %1357 = vsyncpa [#allocation4], 1
    %s1358 = scalar_lea.sflag [#allocation4], 1
    %1359 = vsyncpa %s1358, 1

</llo_original>
